<compile_context>
chip_gen: v7x
topology: tpu7x:2x2x1
jax: 0.10.0
libtpu: 0.0.40
codegen_flags: <defaults>
</compile_context>

<pallas_src>
import functools

import jax
import jax.numpy as jnp
from jax.experimental import pallas as pl
from jax.experimental.pallas import tpu as pltpu


def _round_up(x: int, m: int) -> int:
    return ((x + m - 1) // m) * m


def _bt_loss_kernel(tm, tn, batch,
                    bi_ref, bj_ref,                       # scalar-prefetch (SMEM)
                    pred_col_ref, true_col_ref,           # (tm, 1) tiles
                    pred_row_ref, true_row_ref,           # (1, tn) tiles
                    out_ref):                             # (8, 128) per-block tile
    t = pl.program_id(0)
    i = bi_ref[t]          # row-block index of this enumerated block
    j = bj_ref[t]          # col-block index of this enumerated block

    pc = pred_col_ref[...]            # (tm, 1)
    tc = true_col_ref[...]            # (tm, 1)
    pr = pred_row_ref[...]            # (1, tn)
    tr = true_row_ref[...]            # (1, tn)

    # x = -(t_i - t_j) * (p_i - p_j), with the negation folded into one operand.
    x = (tr - tc) * (pc - pr)         # (tm, tn) by pure broadcasting

    # Stable softplus: log(1 + exp(x)) without overflow.
    sp = jnp.maximum(x, 0.0) + jnp.log(1.0 + jnp.exp(-jnp.abs(x)))

    # Fully-interior block: every element has row >= col and lies inside the
    # real batch, so no mask is needed at all (the common case for large B).
    interior = ((i * tm >= (j + 1) * tn)
                & ((i + 1) * tm <= batch)
                & ((j + 1) * tn <= batch))

    @pl.when(interior)
    def _():
        out_ref[...] = jnp.full((8, 128), jnp.sum(sp), dtype=jnp.float32)

    @pl.when(jnp.logical_not(interior))
    def _():
        # Block-diagonal / batch-boundary blocks: mask AFTER the transcendental
        # so masked entries contribute exactly 0 (matches torch.tril semantics,
        # diagonal included: softplus(0) = log 2).
        rows = i * tm + jax.lax.broadcasted_iota(jnp.int32, (tm, tn), 0)
        cols = j * tn + jax.lax.broadcasted_iota(jnp.int32, (tm, tn), 1)
        mask = (rows >= cols) & (rows < batch) & (cols < batch)
        out_ref[...] = jnp.full((8, 128), jnp.sum(jnp.where(mask, sp, 0.0)),
                                dtype=jnp.float32)


def bradley_terry_loss(pred_mean: jax.Array, true_mean: jax.Array) -> jax.Array:
    """Pallas TPU equivalent of BradleyTerryLoss.forward (1-D inputs, length B)."""
    b = int(pred_mean.shape[0])
    pred_mean = pred_mean.astype(jnp.float32).reshape(b)
    true_mean = true_mean.astype(jnp.float32).reshape(b)

    # Tile sizes: tn wide to amortize per-step overhead, tm modest so the
    # diagonal-block transcendental waste stays ~tm/B.  Footprint (~a handful
    # of tm*tn f32 temporaries = a few MiB) is safe on every generation,
    # including v7x's 64 MiB physical VMEM.
    tm = min(256, _round_up(b, 8))
    tn = min(1024, _round_up(b, 128))
    b_rows = _round_up(b, tm)
    b_cols = _round_up(b, tn)
    num_i = b_rows // tm
    num_j = b_cols // tn

    # Enumerate only the blocks that intersect the lower triangle (static).
    blocks = [(i, j)
              for i in range(num_i)
              for j in range(num_j)
              if (i + 1) * tm > j * tn]
    num_blocks = len(blocks)          # >= 1 (block (0,0) always qualifies)
    block_i = jnp.asarray([bi for bi, _ in blocks], dtype=jnp.int32)
    block_j = jnp.asarray([bj for _, bj in blocks], dtype=jnp.int32)

    pred_col = jnp.pad(pred_mean, (0, b_rows - b)).reshape(b_rows, 1)
    true_col = jnp.pad(true_mean, (0, b_rows - b)).reshape(b_rows, 1)
    pred_row = jnp.pad(pred_mean, (0, b_cols - b)).reshape(1, b_cols)
    true_row = jnp.pad(true_mean, (0, b_cols - b)).reshape(1, b_cols)

    kernel = functools.partial(_bt_loss_kernel, tm, tn, b)
    elems = num_blocks * tm * tn

    partial_tiles = pl.pallas_call(
        kernel,
        out_shape=jax.ShapeDtypeStruct((num_blocks * 8, 128), jnp.float32),
        grid_spec=pltpu.PrefetchScalarGridSpec(
            num_scalar_prefetch=2,          # block_i, block_j -> SMEM
            grid=(num_blocks,),
            in_specs=[
                pl.BlockSpec((tm, 1), lambda t, bi, bj: (bi[t], 0)),  # pred col
                pl.BlockSpec((tm, 1), lambda t, bi, bj: (bi[t], 0)),  # true col
                pl.BlockSpec((1, tn), lambda t, bi, bj: (0, bj[t])),  # pred row
                pl.BlockSpec((1, tn), lambda t, bi, bj: (0, bj[t])),  # true row
            ],
            out_specs=pl.BlockSpec((8, 128), lambda t, bi, bj: (t, 0)),
        ),
        compiler_params=pltpu.CompilerParams(
            # Distinct output tile per block => safe to shard the enumerated
            # block list across TensorCores (balanced: uniform per-block cost).
            dimension_semantics=("parallel",),
            vmem_limit_bytes=48 * 1024 * 1024),
        cost_estimate=pl.CostEstimate(
            flops=8 * elems,
            transcendentals=2 * elems,            # exp + log per visited elem
            bytes_accessed=8 * (b_rows + b_cols) + num_blocks * 8 * 128 * 4),
    )(block_i, block_j, pred_col, true_col, pred_row, true_row)

    # Every element of block t's (8,128) tile holds that block's partial sum;
    # pick one per block and finish the tiny reduction + scale in XLA.
    partials = partial_tiles[::8, 0]
    total = jnp.sum(partials)

    denom = b * (b - 1) / 2.0
    if denom > 0.0:
        return total * (1.0 / denom)
    return total / denom   # B <= 1: matches the reference's divide-by-zero


def _reference(pred_mean, true_mean):
    b = pred_mean.shape[0]
    tc = true_mean[:, None] - true_mean[None, :]
    pc = pred_mean[:, None] - pred_mean[None, :]
    e = jnp.exp(-tc * pc)
    return jnp.sum(jnp.log(1.0 + jnp.tril(e))) / (b * (b - 1) / 2.0)


if __name__ == "__main__":
    key = jax.random.PRNGKey(0)

    # Small shape consistent with the module (a batch of scalar scores).
    b = 8
    k1, k2 = jax.random.split(key)
    pred_scores = jax.random.normal(k1, (b,), dtype=jnp.float32)
    true_scores = jax.random.normal(k2, (b,), dtype=jnp.float32)
    loss = bradley_terry_loss(pred_scores, true_scores)
    jax.block_until_ready(loss)
    ref = _reference(pred_scores, true_scores)
    assert jnp.allclose(loss, ref, rtol=1e-5, atol=1e-5), (loss, ref)

    # Non-aligned batch: exercises padding + in-block masking.
    b = 300
    k3, k4 = jax.random.split(k2)
    pred_scores = jax.random.normal(k3, (b,), dtype=jnp.float32)
    true_scores = jax.random.normal(k4, (b,), dtype=jnp.float32)
    loss = bradley_terry_loss(pred_scores, true_scores)
    jax.block_until_ready(loss)
    ref = _reference(pred_scores, true_scores)
    assert jnp.allclose(loss, ref, rtol=1e-4, atol=1e-4), (loss, ref)

    # Larger batch: exercises the lower-triangle block enumeration, the
    # interior fast path (no mask), and multiple row/col blocks.
    b = 1500
    k5, k6 = jax.random.split(k4)
    pred_scores = jax.random.normal(k5, (b,), dtype=jnp.float32)
    true_scores = jax.random.normal(k6, (b,), dtype=jnp.float32)
    loss = bradley_terry_loss(pred_scores, true_scores)
    jax.block_until_ready(loss)
    ref = _reference(pred_scores, true_scores)
    assert jnp.allclose(loss, ref, rtol=1e-3, atol=1e-3), (loss, ref)

    print("KERNEL_OK")
</pallas_src>

<mosaic_0001>
module attributes {stable_mosaic.version = 11 : i64} {
  func.func @_bt_loss_kernel(%arg0: i32, %arg1: memref<1xi32, #tpu.memory_space<smem>>, %arg2: memref<1xi32, #tpu.memory_space<smem>>, %arg3: memref<8x1xf32, #tpu.memory_space<vmem>>, %arg4: memref<8x1xf32, #tpu.memory_space<vmem>>, %arg5: memref<1x128xf32, #tpu.memory_space<vmem>>, %arg6: memref<1x128xf32, #tpu.memory_space<vmem>>, %arg7: memref<8x128xf32, #tpu.memory_space<vmem>>) attributes {dimension_semantics = [#tpu.dimension_semantics<parallel>], iteration_bounds = array<i64: 1>, scalar_prefetch = 2 : i64, scratch_operands = 0 : i64, tpu.core_type = #tpu.core_type<tc>, window_params = [{transform_indices = @transform_0, window_bounds = array<i64: 8, 1>}, {transform_indices = @transform_1, window_bounds = array<i64: 8, 1>}, {transform_indices = @transform_2, window_bounds = array<i64: 1, 128>}, {transform_indices = @transform_3, window_bounds = array<i64: 1, 128>}, {transform_indices = @transform_4, window_bounds = array<i64: 8, 128>}]} {
    %0 = arith.index_cast %arg0 : i32 to index
    %1 = memref.load %arg1[%0] : memref<1xi32, #tpu.memory_space<smem>>
    %2 = arith.index_cast %arg0 : i32 to index
    %3 = memref.load %arg2[%2] : memref<1xi32, #tpu.memory_space<smem>>
    %c0 = arith.constant 0 : index
    %c0_0 = arith.constant 0 : index
    %4 = vector.load %arg3[%c0, %c0_0] : memref<8x1xf32, #tpu.memory_space<vmem>>, vector<8x1xf32>
    %c0_1 = arith.constant 0 : index
    %c0_2 = arith.constant 0 : index
    %5 = vector.load %arg4[%c0_1, %c0_2] : memref<8x1xf32, #tpu.memory_space<vmem>>, vector<8x1xf32>
    %c0_3 = arith.constant 0 : index
    %c0_4 = arith.constant 0 : index
    %6 = vector.load %arg5[%c0_3, %c0_4] : memref<1x128xf32, #tpu.memory_space<vmem>>, vector<1x128xf32>
    %c0_5 = arith.constant 0 : index
    %c0_6 = arith.constant 0 : index
    %7 = vector.load %arg6[%c0_5, %c0_6] : memref<1x128xf32, #tpu.memory_space<vmem>>, vector<1x128xf32>
    %8 = vector.broadcast %7 : vector<1x128xf32> to vector<8x128xf32>
    %9 = vector.broadcast %5 : vector<8x1xf32> to vector<8x128xf32>
    %10 = arith.subf %8, %9 : vector<8x128xf32>
    %11 = vector.broadcast %4 : vector<8x1xf32> to vector<8x128xf32>
    %12 = vector.broadcast %6 : vector<1x128xf32> to vector<8x128xf32>
    %13 = arith.subf %11, %12 : vector<8x128xf32>
    %14 = arith.mulf %10, %13 : vector<8x128xf32>
    %cst = arith.constant 0.000000e+00 : f32
    %15 = vector.broadcast %cst : f32 to vector<8x128xf32>
    %16 = arith.maximumf %14, %15 : vector<8x128xf32>
    %17 = math.absf %14 : vector<8x128xf32>
    %cst_7 = arith.constant 0.000000e+00 : f32
    %18 = vector.broadcast %cst_7 : f32 to vector<8x128xf32>
    %19 = arith.subf %18, %17 : vector<8x128xf32>
    %20 = math.exp %19 : vector<8x128xf32>
    %cst_8 = arith.constant 1.000000e+00 : f32
    %21 = vector.broadcast %cst_8 : f32 to vector<8x128xf32>
    %22 = arith.addf %21, %20 : vector<8x128xf32>
    %23 = math.log %22 : vector<8x128xf32>
    %24 = arith.addf %16, %23 : vector<8x128xf32>
    %c8_i32 = arith.constant 8 : i32
    %25 = arith.muli %1, %c8_i32 : i32
    %c1_i32 = arith.constant 1 : i32
    %26 = arith.addi %3, %c1_i32 : i32
    %c128_i32 = arith.constant 128 : i32
    %27 = arith.muli %26, %c128_i32 : i32
    %28 = arith.cmpi sge, %25, %27 : i32
    %c1_i32_9 = arith.constant 1 : i32
    %29 = arith.addi %1, %c1_i32_9 : i32
    %c8_i32_10 = arith.constant 8 : i32
    %30 = arith.muli %29, %c8_i32_10 : i32
    %c8_i32_11 = arith.constant 8 : i32
    %31 = arith.cmpi sle, %30, %c8_i32_11 : i32
    %32 = arith.andi %28, %31 : i1
    %c1_i32_12 = arith.constant 1 : i32
    %33 = arith.addi %3, %c1_i32_12 : i32
    %c128_i32_13 = arith.constant 128 : i32
    %34 = arith.muli %33, %c128_i32_13 : i32
    %c8_i32_14 = arith.constant 8 : i32
    %35 = arith.cmpi sle, %34, %c8_i32_14 : i32
    %36 = arith.andi %32, %35 : i1
    %37 = arith.extui %36 : i1 to i32
    %c0_i32 = arith.constant 0 : i32
    %38 = arith.cmpi ne, %37, %c0_i32 : i32
    scf.if %38 {
      %42 = vector.shape_cast %24 : vector<8x128xf32> to vector<1x8x128xf32>
      %cst_16 = arith.constant dense<0.000000e+00> : vector<1xf32>
      %43 = vector.multi_reduction <add>, %42, %cst_16 [1, 2] : vector<1x8x128xf32> to vector<1xf32>
      %44 = vector.shape_cast %43 : vector<1xf32> to vector<1x1x1xf32>
      %45 = vector.extract %44[0, 0, 0] : f32 from vector<1x1x1xf32>
      %46 = vector.broadcast %45 : f32 to vector<8x128xf32>
      %c0_17 = arith.constant 0 : index
      %c0_18 = arith.constant 0 : index
      %47 = vector.load %arg7[%c0_17, %c0_18] : memref<8x128xf32, #tpu.memory_space<vmem>>, vector<8x128xf32>
      tpu.vector_store %arg7[%c0_17, %c0_18], %46 {strides = array<i32>} : memref<8x128xf32, #tpu.memory_space<vmem>>, vector<8x128xf32>,
    } else {
    }
    %true = arith.constant true
    %39 = arith.xori %36, %true : i1
    %40 = arith.extui %39 : i1 to i32
    %c0_i32_15 = arith.constant 0 : i32
    %41 = arith.cmpi ne, %40, %c0_i32_15 : i32
    scf.if %41 {
      %c8_i32_16 = arith.constant 8 : i32
      %42 = arith.muli %1, %c8_i32_16 : i32
      %43 = tpu.iota {dimensions = array<i32: 0>} : vector<8x128xi32>
      %44 = vector.broadcast %42 : i32 to vector<8x128xi32>
      %45 = arith.addi %44, %43 : vector<8x128xi32>
      %c128_i32_17 = arith.constant 128 : i32
      %46 = arith.muli %3, %c128_i32_17 : i32
      %47 = tpu.iota {dimensions = array<i32: 1>} : vector<8x128xi32>
      %48 = vector.broadcast %46 : i32 to vector<8x128xi32>
      %49 = arith.addi %48, %47 : vector<8x128xi32>
      %50 = arith.cmpi sge, %45, %49 : vector<8x128xi32>
      %c8_i32_18 = arith.constant 8 : i32
      %51 = vector.broadcast %c8_i32_18 : i32 to vector<8x128xi32>
      %52 = arith.cmpi slt, %45, %51 : vector<8x128xi32>
      %53 = arith.andi %50, %52 : vector<8x128xi1>
      %c8_i32_19 = arith.constant 8 : i32
      %54 = vector.broadcast %c8_i32_19 : i32 to vector<8x128xi32>
      %55 = arith.cmpi slt, %49, %54 : vector<8x128xi32>
      %56 = arith.andi %53, %55 : vector<8x128xi1>
      %cst_20 = arith.constant 0.000000e+00 : f32
      %57 = vector.broadcast %cst_20 : f32 to vector<8x128xf32>
      %58 = arith.select %56, %24, %57 : vector<8x128xi1>, vector<8x128xf32>
      %59 = vector.shape_cast %58 : vector<8x128xf32> to vector<1x8x128xf32>
      %cst_21 = arith.constant dense<0.000000e+00> : vector<1xf32>
      %60 = vector.multi_reduction <add>, %59, %cst_21 [1, 2] : vector<1x8x128xf32> to vector<1xf32>
      %61 = vector.shape_cast %60 : vector<1xf32> to vector<1x1x1xf32>
      %62 = vector.extract %61[0, 0, 0] : f32 from vector<1x1x1xf32>
      %63 = vector.broadcast %62 : f32 to vector<8x128xf32>
      %c0_22 = arith.constant 0 : index
      %c0_23 = arith.constant 0 : index
      %64 = vector.load %arg7[%c0_22, %c0_23] : memref<8x128xf32, #tpu.memory_space<vmem>>, vector<8x128xf32>
      tpu.vector_store %arg7[%c0_22, %c0_23], %63 {strides = array<i32>} : memref<8x128xf32, #tpu.memory_space<vmem>>, vector<8x128xf32>,
    } else {
    }
    return
  }
  func.func @transform_0(%arg0: i32, %arg1: memref<1xi32, #tpu.memory_space<smem>>, %arg2: memref<1xi32, #tpu.memory_space<smem>>) -> (i32, i32) {
    %0 = arith.index_cast %arg0 : i32 to index
    %1 = memref.load %arg1[%0] : memref<1xi32, #tpu.memory_space<smem>>
    %c0_i32 = arith.constant 0 : i32
    %c0_i32_0 = arith.constant 0 : i32
    return %1, %c0_i32 : i32, i32
  }
  func.func @transform_1(%arg0: i32, %arg1: memref<1xi32, #tpu.memory_space<smem>>, %arg2: memref<1xi32, #tpu.memory_space<smem>>) -> (i32, i32) {
    %0 = arith.index_cast %arg0 : i32 to index
    %1 = memref.load %arg1[%0] : memref<1xi32, #tpu.memory_space<smem>>
    %c0_i32 = arith.constant 0 : i32
    %c0_i32_0 = arith.constant 0 : i32
    return %1, %c0_i32 : i32, i32
  }
  func.func @transform_2(%arg0: i32, %arg1: memref<1xi32, #tpu.memory_space<smem>>, %arg2: memref<1xi32, #tpu.memory_space<smem>>) -> (i32, i32) {
    %0 = arith.index_cast %arg0 : i32 to index
    %1 = memref.load %arg2[%0] : memref<1xi32, #tpu.memory_space<smem>>
    %c0_i32 = arith.constant 0 : i32
    %c0_i32_0 = arith.constant 0 : i32
    return %c0_i32, %1 : i32, i32
  }
  func.func @transform_3(%arg0: i32, %arg1: memref<1xi32, #tpu.memory_space<smem>>, %arg2: memref<1xi32, #tpu.memory_space<smem>>) -> (i32, i32) {
    %0 = arith.index_cast %arg0 : i32 to index
    %1 = memref.load %arg2[%0] : memref<1xi32, #tpu.memory_space<smem>>
    %c0_i32 = arith.constant 0 : i32
    %c0_i32_0 = arith.constant 0 : i32
    return %c0_i32, %1 : i32, i32
  }
  func.func @transform_4(%arg0: i32, %arg1: memref<1xi32, #tpu.memory_space<smem>>, %arg2: memref<1xi32, #tpu.memory_space<smem>>) -> (i32, i32) {
    %c0_i32 = arith.constant 0 : i32
    %c0_i32_0 = arith.constant 0 : i32
    return %arg0, %c0_i32 : i32, i32
  }
}

</mosaic_0001>

<llo_original>
// kernel: tpu_custom_call.1
$region0: #{tpu_custom_call.1}
  #allocation0 [shape = 'u32[]', space=smem, size = 0x4, offset = 0x4, fixed_abs, tag = 'smem constant byte address 0x4 - core index']
  #allocation1 [shape = 'u32[144,128]{1,0:T(1,128)}', space=vmem, size = 0x12000, scoped, tag = 'internal scratch']
  #allocation2 [shape = 's32[1]{0}', space=sflag, size = 0x4, scoped, tag = 'scoped memory for tpu_custom_call.1']
  #allocation3 [shape = 's32[1]{0:T(128)S(6)}', space=smem, size = 0x200, scoped, tag = 'prefetched SMEM operand 0']
  #allocation4 [shape = 's32[1]{0:T(128)S(6)}', space=smem, size = 0x200, scoped, tag = 'prefetched SMEM operand 1']
  %s0 = inlined_call_operand.<no memory space> [shape: s32[1], index: 0, kind: input, shape index: {}]
  %s1 = inlined_call_operand.<no memory space> [shape: s32[1], index: 1, kind: input, shape index: {}]
  %s2 = inlined_call_operand.vmem [shape: f32[8,1], index: 2, kind: input, shape index: {}]
  %s3 = inlined_call_operand.vmem [shape: f32[8,1], index: 3, kind: input, shape index: {}]
  %s4 = inlined_call_operand.vmem [shape: f32[1,128], index: 4, kind: input, shape index: {}]
  %s5 = inlined_call_operand.vmem [shape: f32[1,128], index: 5, kind: input, shape index: {}]
  %s6 = inlined_call_operand.hbm [shape: f32[8,128], index: 6, kind: output, shape index: {}]
  %s7 = sld [smem:[#allocation0]]
  $region34: #{tpu_custom_call.1} parent=0
    _
  %s9 = ssub.s32 1, %s7
  %s10 = scalar_select 0, %s9, %s7
  %11 = sst [smem:[#allocation3]] %s0
  %12 = sst [smem:[#allocation4]] %s1
  $region1: #{tpu_custom_call.1} parent=0
    #allocation5 [shape = 'u8[4096]{0}', space=vmem, size = 0x1000, scoped, tag = 'output window, operand 0, single buffered']
    #allocation6 [shape = 's32[1]{0}', space=sflag, size = 0x4, scoped, tag = 'scoped memory for tpu_custom_call.1']
    %13 = vsyncpa [#allocation6], 0
    // Predicated region
    $region2: #{tpu_custom_call.1} parent=1 // pred_check
      _
    $region3: #{tpu_custom_call.1} parent=1 // pred_check_branch
      %15 = sbr.rel (0) target = $region5
    $region4: #{tpu_custom_call.1} parent=1 // pred_region
      %s16 = sld [smem:[#allocation3]]
      %p17 = scmp.lt.s32.totalorder %s16, 0
      %s18 = scalar_select %p17, %s16, 0
      %s19 = smul.addr %s18, 8
      %s20 = scalar_lea.vmem %s2, %s19
      %s21 = sld [smem:[#allocation3]]
    $region5: #{tpu_custom_call.1} parent=1 // pred_fallthru
      _
    // Predicated region
    $region6: #{tpu_custom_call.1} parent=1 // pred_check
      _
    $region7: #{tpu_custom_call.1} parent=1 // pred_check_branch
      %23 = sbr.rel (0) target = $region9
    $region8: #{tpu_custom_call.1} parent=1 // pred_region
      %s24 = sld [smem:[#allocation3]]
      %p25 = scmp.lt.s32.totalorder %s24, 0
      %s26 = scalar_select %p25, %s24, 0
      %s27 = smul.addr %s26, 8
      %s28 = scalar_lea.vmem %s3, %s27
      %s29 = sld [smem:[#allocation3]]
    $region9: #{tpu_custom_call.1} parent=1 // pred_fallthru
      _
    // Predicated region
    $region10: #{tpu_custom_call.1} parent=1 // pred_check
      _
    $region11: #{tpu_custom_call.1} parent=1 // pred_check_branch
      %31 = sbr.rel (0) target = $region13
    $region12: #{tpu_custom_call.1} parent=1 // pred_region
      %s32 = sld [smem:[#allocation4]]
      %p33 = scmp.lt.s32.totalorder %s32, 0
      %s34 = scalar_select %p33, %s32, 0
      %s35 = scalar_lea.vmem %s4, %s34
      %s36 = sld [smem:[#allocation4]]
    $region13: #{tpu_custom_call.1} parent=1 // pred_fallthru
      _
    // Predicated region
    $region14: #{tpu_custom_call.1} parent=1 // pred_check
      _
    $region15: #{tpu_custom_call.1} parent=1 // pred_check_branch
      %38 = sbr.rel (0) target = $region17
    $region16: #{tpu_custom_call.1} parent=1 // pred_region
      %s39 = sld [smem:[#allocation4]]
      %p40 = scmp.lt.s32.totalorder %s39, 0
      %s41 = scalar_select %p40, %s39, 0
      %s42 = scalar_lea.vmem %s5, %s41
      %s43 = sld [smem:[#allocation4]]
    $region17: #{tpu_custom_call.1} parent=1 // pred_fallthru
      _
    %s44 = sld [smem:[#allocation3]]
    %p45 = scmp.lt.s32.totalorder %s44, 0
    %s46 = scalar_select %p45, %s44, 0
    %s47 = smul.addr %s46, 8
    %s48 = scalar_lea.vmem %s2, %s47
    %s49 = sld [smem:[#allocation3]]
    %p50 = scmp.lt.s32.totalorder %s49, 0
    %s51 = scalar_select %p50, %s49, 0
    %s52 = smul.addr %s51, 8
    %s53 = scalar_lea.vmem %s3, %s52
    %s54 = sld [smem:[#allocation4]]
    %p55 = scmp.lt.s32.totalorder %s54, 0
    %s56 = scalar_select %p55, %s54, 0
    %s57 = scalar_lea.vmem %s4, %s56
    %s58 = sld [smem:[#allocation4]]
    %p59 = scmp.lt.s32.totalorder %s58, 0
    %s60 = scalar_select %p59, %s58, 0
    %s61 = scalar_lea.vmem %s5, %s60
    %s62 = sld [smem:[#allocation3]]
    %p63 = scmp.lt.s32.totalorder %s62, 0
    %s64 = scalar_select %p63, %s62, 0
    %s65 = smul.addr %s64, 8
    %s66 = scalar_lea.vmem %s2, %s65
    %s67 = sld [smem:[#allocation3]]
    %s68 = sld [smem:[#allocation3]]
    %p69 = scmp.lt.s32.totalorder %s68, 0
    %s70 = scalar_select %p69, %s68, 0
    %s71 = smul.addr %s70, 8
    %s72 = scalar_lea.vmem %s3, %s71
    %s73 = sld [smem:[#allocation3]]
    %s74 = sld [smem:[#allocation4]]
    %p75 = scmp.lt.s32.totalorder %s74, 0
    %s76 = scalar_select %p75, %s74, 0
    %s77 = scalar_lea.vmem %s4, %s76
    %s78 = sld [smem:[#allocation4]]
    %s79 = sld [smem:[#allocation4]]
    %p80 = scmp.lt.s32.totalorder %s79, 0
    %s81 = scalar_select %p80, %s79, 0
    %s82 = scalar_lea.vmem %s5, %s81
    %s83 = sld [smem:[#allocation4]]
    %s84 = sld [smem:[#allocation3]]
    %s85 = sld [smem:[#allocation4]]
    %v86 = vld [vmem:[%s66] sm:$0xff]
    %v87 = vld [vmem:[%s72] sm:$0xff]
    %v88 = vld [vmem:[%s77] sm:$0x1]
    %v89 = vld [vmem:[%s82] sm:$0x1]
    %v91 = vlaneseq
    %v92 = vshrl.u32 %v91, 7
    %v93 = vsub.s32 0, %v92
    %v94 = vrot.slane %v89, %v93
    %97 = vset.pattern.permute.xlu0 0
    %98 = vperm.xlu0 %97, %v87
    %v99 = vpop.permute.xlu0 %98
    %v101 = vsub.f32 %v94, %v99
    %103 = vset.pattern.permute.xlu0 0
    %104 = vperm.xlu0 %103, %v86
    %v105 = vpop.permute.xlu0 %104
    %v108 = vlaneseq
    %v109 = vshrl.u32 %v108, 7
    %v110 = vsub.s32 0, %v109
    %v111 = vrot.slane %v88, %v110
    %v113 = vsub.f32 %v105, %v111
    %v114 = vmul.f32 %v101, %v113
    %v115 = vmax.f32 %v114, 0.0
    %v116 = vand.u32 2147483647, %v114
    %v117 = vsub.f32 0.0, %v116
    %v118 = vmul.f32 %v117, 1.442695
    %v119 = vpow.pop %v118
    %v120 = vadd.f32 %v119, 1.0
    %v121 = vlog2.pop %v120
    %v122 = vmul.f32 %v121, 0.6931472
    %v123 = vadd.f32 %v115, %v122
    %s124 = smul.u32 %s84, 8
    %s125 = sadd.s32 %s85, 1
    %s126 = smul.u32 %s125, 128
    %p127 = scmp.ge.s32.totalorder %s124, %s126
    %s128 = sadd.s32 %s84, 1
    %s129 = smul.u32 %s128, 8
    %p130 = scmp.le.s32.totalorder %s129, 8
    %p131 = pnand %p127, %p130
    %p132 = pneg %p131
    %p133 = scmp.le.s32.totalorder %s126, 8
    %p134 = pnand %p132, %p133
    %p135 = pneg %p134
    // Predicated region
    $region18: #{tpu_custom_call.1} parent=1 // pred_check
      _
    $region19: #{tpu_custom_call.1} parent=1 // pred_check_branch
      %137 = sbr.rel (%p134) target = $region21
    $region20: #{tpu_custom_call.1} parent=1 // pred_region
      %138 = vadd.xlane.f32.xlu0 %v123
      %v139 = vpop.xlane.xlu0 %138
      %v140 = vrot.slane %v139, 4
      %v141 = vadd.f32 %v139, %v140
      %v142 = vrot.slane %v141, 2
      %v143 = vadd.f32 %v141, %v142
      %v144 = vrot.slane %v143, 1
      %v145 = vadd.f32 %v143, %v144
      %s146 = vtos %v145
      %v147 = vstv %s146
      %148 = vst [vmem:[#allocation5] sm:$0xff] %v147
    $region21: #{tpu_custom_call.1} parent=1 // pred_fallthru
      _
    %p149 = pneg %p135
    // Predicated region
    $region22: #{tpu_custom_call.1} parent=1 // pred_check
      _
    $region23: #{tpu_custom_call.1} parent=1 // pred_check_branch
      %151 = sbr.rel (%p135) target = $region25
    $region24: #{tpu_custom_call.1} parent=1 // pred_region
      %v152 = vlaneseq
      %v153 = vshrl.u32 %v152, 7
      %v154 = vstv %s124
      %v155 = vadd.s32 %v154, %v153
      %s156 = smul.u32 %s85, 128
      %v157 = vlaneseq
      %v158 = vand.u32 %v157, 127
      %v159 = vstv %s156
      %v160 = vadd.s32 %v159, %v158
      %vm161 = vcmp.ge.s32.totalorder %v155, %v160
      %vm162 = vcmp.lt.s32.totalorder %v155, 8
      %vm163 = vmand %vm161, %vm162
      %vm164 = vcmp.lt.s32.totalorder %v160, 8
      %vm165 = vmand %vm163, %vm164
      %v166 = vsel %vm165, %v123, 0.0
      %167 = vadd.xlane.f32.xlu0 %v166
      %v168 = vpop.xlane.xlu0 %167
      %v169 = vrot.slane %v168, 4
      %v170 = vadd.f32 %v168, %v169
      %v171 = vrot.slane %v170, 2
      %v172 = vadd.f32 %v170, %v171
      %v173 = vrot.slane %v172, 1
      %v174 = vadd.f32 %v172, %v173
      %s175 = vtos %v174
      %v176 = vstv %s175
      %177 = vst [vmem:[#allocation5] sm:$0xff] %v176
    $region25: #{tpu_custom_call.1} parent=1 // pred_fallthru
      _
    // Predicated region
    $region26: #{tpu_custom_call.1} parent=1 // pred_check
      _
    $region27: #{tpu_custom_call.1} parent=1 // pred_check_branch
      %179 = sbr.rel (0) target = $region29
    $region28: #{tpu_custom_call.1} parent=1 // pred_region
      %s181 = ssub.s32 128, 128
      %182 = vsyncadd [#allocation6], %s181
      %s184 = sshll.u32 [#allocation5], 4
      %s185 = int_to_ptr.vmem [resolvable:$true] %s184
      %187 = dma.vmem_to_hbm [thread:$0]  %s185, 128, %s6, [#allocation6]
    $region29: #{tpu_custom_call.1} parent=1 // pred_fallthru
      _
    // Predicated region
    $region30: #{tpu_custom_call.1} parent=1 // pred_check
      _
    $region31: #{tpu_custom_call.1} parent=1 // pred_check_branch
      %189 = sbr.rel (0) target = $region33
    $region32: #{tpu_custom_call.1} parent=1 // pred_region
      %190 = dma.done [#allocation6], 128
    $region33: #{tpu_custom_call.1} parent=1 // pred_fallthru
      _
    %191 = vsyncpa [#allocation6], 1

</llo_original>
